<compile_context>
chip_gen: v5e
topology: v5e:2x2
jax: 0.10.0
libtpu: 0.0.40
codegen_flags: <defaults>
</compile_context>

<pallas_src>
import jax
import jax.numpy as jnp
from jax.experimental import pallas as pl
from jax.experimental.pallas import tpu as pltpu

IN_DIM = 784
HID_DIM = 128
OUT_DIM = 10
OUT_PAD = 128  # lane-dense padded output width (multiple of 128)


def mlp_kernel(x_ref, w1_ref, b1_ref, w2_ref, b2_ref, o_ref):
    # x_ref:  (tb, 784)   f32 or bf16 (matches input)
    # w1_ref: (784, 128)  same dtype as x
    # b1_ref: (1, 128)    f32
    # w2_ref: (128, 128)  f32, zero-padded beyond column 10
    # b2_ref: (1, 128)    f32, zero-padded beyond column 10
    # o_ref:  (tb, 128)   bf16 (default) or f32
    h = jnp.dot(x_ref[...], w1_ref[...], preferred_element_type=jnp.float32)
    h = jnp.maximum(h + b1_ref[...], 0.0)          # bias + ReLU in f32
    o = jnp.dot(h, w2_ref[...], preferred_element_type=jnp.float32)
    o_ref[...] = (o + b2_ref[...]).astype(o_ref.dtype)


def _spec(shape, index_map, nbuf=None):
    """BlockSpec with optional pipeline depth; falls back if unsupported."""
    if nbuf is not None:
        try:
            return pl.BlockSpec(shape, index_map, pipeline_mode=pl.Buffered(nbuf))
        except Exception:
            pass
    return pl.BlockSpec(shape, index_map)


def _device_kind():
    try:
        return jax.devices()[0].device_kind.lower()
    except Exception:
        return ""


def _auto_config(x_itemsize):
    """Returns (tb, vmem_limit_bytes, min_grid, x_buffers) per TPU generation."""
    kind = _device_kind()
    narrow = x_itemsize <= 2  # bf16 / fp16 x stream
    if "v7" in kind or "tpu7" in kind:
        # 64 MiB physical VMEM, 2 TCs/chip: bigger tiles + grid >= 2.
        return (4096 if narrow else 2048), 48 << 20, 2, 3
    if "v6" in kind:
        return (4096 if narrow else 2048), 64 << 20, 1, 3
    if "v5" in kind:
        # Stay under the 16 MiB default scoped-VMEM limit.
        return (2048 if narrow else 1024), None, 1, 2
    # Unknown / fallback: conservative.
    return 1024, None, 1, 2


def mlp_forward(x, w1, b1, w2, b2, *, tb=None, out_dtype=jnp.bfloat16,
                logits_dtype=jnp.float32, vmem_limit_bytes=None, buffers_x=None):
    """x: (B, 1, 28, 28) or (B, 784). Returns (B, 10) in logits_dtype.

    Call under jax.jit so the wrapper prep (pad, weight zero-pad, final
    slice/upcast) fuses instead of being separate HBM passes.
    """
    x2d = x.reshape(-1, IN_DIM)
    B = x2d.shape[0]

    # Respect the incoming dtype: do NOT cast x to bf16 here (that would add a
    # full extra HBM round-trip). Produce bf16 upstream if wanted.
    xd = jnp.dtype(x2d.dtype)
    if xd not in (jnp.dtype(jnp.bfloat16), jnp.dtype(jnp.float16),
                  jnp.dtype(jnp.float32)):
        x2d = x2d.astype(jnp.float32)
        xd = jnp.dtype(jnp.float32)

    auto_tb, auto_vmem, min_grid, auto_buf = _auto_config(xd.itemsize)
    if tb is None:
        tb = auto_tb
    if vmem_limit_bytes is None:
        vmem_limit_bytes = auto_vmem
    if buffers_x is None:
        buffers_x = auto_buf

    # Minimal sublane padding only (multiple of 8 rows); the cdiv grid masks
    # the partial last block, and garbage rows are dropped by the out[:B] slice.
    Bp = ((B + 7) // 8) * 8
    if Bp != B:
        x2d = jnp.pad(x2d, ((0, Bp - B), (0, 0)))

    tb = max(8, (int(tb) // 8) * 8)
    tb = min(tb, Bp)
    if min_grid >= 2 and Bp >= 16:
        # Keep the batch axis split so both v7x TensorCores get work.
        tb = min(tb, ((Bp // 2 + 7) // 8) * 8)
    grid = (pl.cdiv(Bp, tb),)

    # Weights: w1 matches x's dtype (feeds the bf16 MXU when x is bf16);
    # second layer + biases stay f32.  Head zero-padded to 128 lanes so the
    # second matmul is a full MXU tile and output stores are unmasked vst.
    w1c = w1.astype(xd)
    b1r = jnp.asarray(b1, jnp.float32).reshape(1, HID_DIM)
    w2p = jnp.zeros((HID_DIM, OUT_PAD), jnp.float32).at[:, :OUT_DIM].set(
        jnp.asarray(w2, jnp.float32))
    b2p = jnp.zeros((1, OUT_PAD), jnp.float32).at[:, :OUT_DIM].set(
        jnp.asarray(b2, jnp.float32).reshape(1, OUT_DIM))

    out = pl.pallas_call(
        mlp_kernel,
        out_shape=jax.ShapeDtypeStruct((Bp, OUT_PAD), out_dtype),
        grid=grid,
        in_specs=[
            _spec((tb, IN_DIM), lambda i: (i, 0), buffers_x),       # x: streamed
            _spec((IN_DIM, HID_DIM), lambda i: (0, 0), 1),          # w1: resident
            _spec((1, HID_DIM), lambda i: (0, 0), 1),               # b1: resident
            _spec((HID_DIM, OUT_PAD), lambda i: (0, 0), 1),         # w2 (padded)
            _spec((1, OUT_PAD), lambda i: (0, 0), 1),               # b2 (padded)
        ],
        out_specs=pl.BlockSpec((tb, OUT_PAD), lambda i: (i, 0)),
        compiler_params=pltpu.CompilerParams(
            dimension_semantics=("parallel",),
            vmem_limit_bytes=vmem_limit_bytes,
        ),
    )(x2d, w1c, b1r, w2p, b2p)

    return out[:B, :OUT_DIM].astype(logits_dtype)


def init_params(key):
    """Deterministic init matching nn.Linear shapes (stored transposed:
    (in, out) so the kernel computes x @ W + b)."""
    k1, k2, k3, k4 = jax.random.split(key, 4)
    bound1 = 1.0 / jnp.sqrt(IN_DIM)
    bound2 = 1.0 / jnp.sqrt(HID_DIM)
    w1 = jax.random.uniform(k1, (IN_DIM, HID_DIM), jnp.float32, -bound1, bound1)
    b1 = jax.random.uniform(k2, (1, HID_DIM), jnp.float32, -bound1, bound1)
    w2 = jax.random.uniform(k3, (HID_DIM, OUT_DIM), jnp.float32, -bound2, bound2)
    b2 = jax.random.uniform(k4, (1, OUT_DIM), jnp.float32, -bound2, bound2)
    return w1, b1, w2, b2


if __name__ == "__main__":
    key = jax.random.PRNGKey(0)
    kx, kp = jax.random.split(key)

    # Small MNIST-like batch: (B, 1, 28, 28) -> flattened to (B, 784).
    x = jax.random.normal(kx, (2, 1, 28, 28), jnp.float32)
    w1, b1, w2, b2 = init_params(kp)

    fwd = jax.jit(
        mlp_forward,
        static_argnames=("tb", "out_dtype", "logits_dtype",
                         "vmem_limit_bytes", "buffers_x"),
    )

    x2d = x.reshape(-1, IN_DIM)
    ref = jnp.maximum(x2d @ w1 + b1, 0.0) @ w2 + b2

    # Default fast path: bf16 writeback of the padded slab, f32 logits out.
    out = fwd(x, w1, b1, w2, b2)
    jax.block_until_ready(out)
    assert out.shape == (2, OUT_DIM) and out.dtype == jnp.float32
    assert jnp.allclose(out, ref, atol=2e-2, rtol=2e-2)

    # Exact-parity path: f32 writeback.
    out_f32 = fwd(x, w1, b1, w2, b2, out_dtype=jnp.float32)
    jax.block_until_ready(out_f32)
    assert jnp.allclose(out_f32, ref, atol=1e-4, rtol=1e-4)

    # bf16-activation path: x arrives in bf16 from upstream (no wrapper cast).
    out_bf = fwd(x.astype(jnp.bfloat16), w1, b1, w2, b2)
    jax.block_until_ready(out_bf)
    assert out_bf.shape == (2, OUT_DIM)
    assert bool(jnp.isfinite(out_bf).all())
    assert jnp.allclose(out_bf, ref, atol=1e-1, rtol=1e-1)

    print("KERNEL_OK")
</pallas_src>

<mosaic_0001>
module attributes {stable_mosaic.version = 11 : i64} {
  func.func @mlp_kernel(%arg0: i32, %arg1: memref<8x784xf32, #tpu.memory_space<vmem>>, %arg2: memref<784x128xf32, #tpu.memory_space<vmem>>, %arg3: memref<1x128xf32, #tpu.memory_space<vmem>>, %arg4: memref<128x128xf32, #tpu.memory_space<vmem>>, %arg5: memref<1x128xf32, #tpu.memory_space<vmem>>, %arg6: memref<8x128xbf16, #tpu.memory_space<vmem>>) attributes {dimension_semantics = [#tpu.dimension_semantics<parallel>], iteration_bounds = array<i64: 1>, scalar_prefetch = 0 : i64, scratch_operands = 0 : i64, tpu.core_type = #tpu.core_type<tc>, window_params = [{pipeline_mode = #tpu.pipeline_mode<double_buffered>, transform_indices = @transform_0, window_bounds = array<i64: 8, 784>}, {pipeline_mode = #tpu.pipeline_mode<synchronous>, transform_indices = @transform_1, window_bounds = array<i64: 784, 128>}, {pipeline_mode = #tpu.pipeline_mode<synchronous>, transform_indices = @transform_2, window_bounds = array<i64: 1, 128>}, {pipeline_mode = #tpu.pipeline_mode<synchronous>, transform_indices = @transform_3, window_bounds = array<i64: 128, 128>}, {pipeline_mode = #tpu.pipeline_mode<synchronous>, transform_indices = @transform_4, window_bounds = array<i64: 1, 128>}, {transform_indices = @transform_5, window_bounds = array<i64: 8, 128>}]} {
    %c0 = arith.constant 0 : index
    %c0_0 = arith.constant 0 : index
    %0 = vector.load %arg1[%c0, %c0_0] : memref<8x784xf32, #tpu.memory_space<vmem>>, vector<8x784xf32>
    %c0_1 = arith.constant 0 : index
    %c0_2 = arith.constant 0 : index
    %1 = vector.load %arg2[%c0_1, %c0_2] : memref<784x128xf32, #tpu.memory_space<vmem>>, vector<784x128xf32>
    %cst = arith.constant dense<0.000000e+00> : vector<8x128xf32>
    %2 = tpu.matmul %0, %1, %cst {dimension_numbers = #tpu.dot_dimension_numbers<[1], [0], [0], [1], [0, 0, 1, 1], [], []>} : vector<8x784xf32>, vector<784x128xf32>, vector<8x128xf32> -> vector<8x128xf32>
    %c0_3 = arith.constant 0 : index
    %c0_4 = arith.constant 0 : index
    %3 = vector.load %arg3[%c0_3, %c0_4] : memref<1x128xf32, #tpu.memory_space<vmem>>, vector<1x128xf32>
    %4 = vector.broadcast %3 : vector<1x128xf32> to vector<8x128xf32>
    %5 = arith.addf %2, %4 : vector<8x128xf32>
    %cst_5 = arith.constant 0.000000e+00 : f32
    %6 = vector.broadcast %cst_5 : f32 to vector<8x128xf32>
    %7 = arith.maximumf %5, %6 : vector<8x128xf32>
    %c0_6 = arith.constant 0 : index
    %c0_7 = arith.constant 0 : index
    %8 = vector.load %arg4[%c0_6, %c0_7] : memref<128x128xf32, #tpu.memory_space<vmem>>, vector<128x128xf32>
    %cst_8 = arith.constant dense<0.000000e+00> : vector<8x128xf32>
    %9 = tpu.matmul %7, %8, %cst_8 {dimension_numbers = #tpu.dot_dimension_numbers<[1], [0], [0], [1], [0, 0, 1, 1], [], []>} : vector<8x128xf32>, vector<128x128xf32>, vector<8x128xf32> -> vector<8x128xf32>
    %c0_9 = arith.constant 0 : index
    %c0_10 = arith.constant 0 : index
    %10 = vector.load %arg5[%c0_9, %c0_10] : memref<1x128xf32, #tpu.memory_space<vmem>>, vector<1x128xf32>
    %11 = vector.broadcast %10 : vector<1x128xf32> to vector<8x128xf32>
    %12 = arith.addf %9, %11 : vector<8x128xf32>
    %13 = arith.truncf %12 : vector<8x128xf32> to vector<8x128xbf16>
    %c0_11 = arith.constant 0 : index
    %c0_12 = arith.constant 0 : index
    %14 = vector.load %arg6[%c0_11, %c0_12] : memref<8x128xbf16, #tpu.memory_space<vmem>>, vector<8x128xbf16>
    tpu.vector_store %arg6[%c0_11, %c0_12], %13 {strides = array<i32>} : memref<8x128xbf16, #tpu.memory_space<vmem>>, vector<8x128xbf16>,
    return
  }
  func.func @transform_0(%arg0: i32) -> (i32, i32) {
    %c0_i32 = arith.constant 0 : i32
    %c0_i32_0 = arith.constant 0 : i32
    return %arg0, %c0_i32 : i32, i32
  }
  func.func @transform_1(%arg0: i32) -> (i32, i32) {
    %c0_i32 = arith.constant 0 : i32
    %c0_i32_0 = arith.constant 0 : i32
    %c0_i32_1 = arith.constant 0 : i32
    return %c0_i32, %c0_i32_0 : i32, i32
  }
  func.func @transform_2(%arg0: i32) -> (i32, i32) {
    %c0_i32 = arith.constant 0 : i32
    %c0_i32_0 = arith.constant 0 : i32
    %c0_i32_1 = arith.constant 0 : i32
    return %c0_i32, %c0_i32_0 : i32, i32
  }
  func.func @transform_3(%arg0: i32) -> (i32, i32) {
    %c0_i32 = arith.constant 0 : i32
    %c0_i32_0 = arith.constant 0 : i32
    %c0_i32_1 = arith.constant 0 : i32
    return %c0_i32, %c0_i32_0 : i32, i32
  }
  func.func @transform_4(%arg0: i32) -> (i32, i32) {
    %c0_i32 = arith.constant 0 : i32
    %c0_i32_0 = arith.constant 0 : i32
    %c0_i32_1 = arith.constant 0 : i32
    return %c0_i32, %c0_i32_0 : i32, i32
  }
  func.func @transform_5(%arg0: i32) -> (i32, i32) {
    %c0_i32 = arith.constant 0 : i32
    %c0_i32_0 = arith.constant 0 : i32
    return %arg0, %c0_i32 : i32, i32
  }
}

</mosaic_0001>

<llo_original>
// kernel: mlp_forward.1
$region0: #{mlp_forward.1}
  #allocation0 [shape = 'u32[]', space=smem, size = 0x4, offset = 0x4, fixed_abs, tag = 'smem constant byte address 0x4 - core index']
  #allocation1 [shape = 'u32[72,128]{1,0:T(1,128)}', space=vmem, size = 0x9000, scoped, tag = 'internal scratch']
  %s0 = inlined_call_operand.vmem [shape: f32[8,784], index: 0, kind: input, shape index: {}]
  %s1 = inlined_call_operand.hbm [shape: f32[784,128], index: 1, kind: input, shape index: {}]
  %s2 = inlined_call_operand.vmem [shape: f32[1,128], index: 2, kind: input, shape index: {}]
  %s3 = inlined_call_operand.vmem [shape: f32[128,128], index: 3, kind: input, shape index: {}]
  %s4 = inlined_call_operand.vmem [shape: f32[1,128], index: 4, kind: input, shape index: {}]
  %s5 = inlined_call_operand.vmem [shape: bf16[8,128], index: 5, kind: output, shape index: {}]
  %s6 = sld [smem:[#allocation0]]
  $region34: #{mlp_forward.1} parent=0
    _
  %s8 = ssub.s32 1, %s6
  %s9 = scalar_select 0, %s8, %s6
  $region1: #{mlp_forward.1} parent=0
    #allocation2 [shape = 'u8[401408]{0}', space=vmem, size = 0x62000, scoped, tag = 'input window, operand 1, single buffered']
    #allocation3 [shape = 's32[1]{0}', space=sflag, size = 0x4, scoped, tag = 'scoped memory for mlp_forward.1']
    %10 = vsyncpa [#allocation3], 0
    // Predicated region
    $region2: #{mlp_forward.1} parent=1 // pred_check
      _
    $region3: #{mlp_forward.1} parent=1 // pred_check_branch
      %12 = sbr.rel (0) target = $region5
    $region4: #{mlp_forward.1} parent=1 // pred_region
      _
    $region5: #{mlp_forward.1} parent=1 // pred_fallthru
      _
    // Predicated region
    $region6: #{mlp_forward.1} parent=1 // pred_check
      _
    $region7: #{mlp_forward.1} parent=1 // pred_check_branch
      %14 = sbr.rel (0) target = $region9
    $region8: #{mlp_forward.1} parent=1 // pred_region
      %16 = vsyncadd [#allocation3], 0
      %s17 = sshll.u32 %s1, 4
      %s18 = int_to_ptr.hbm [resolvable:$true] %s17
      %s19 = sshll.u32 [#allocation2], 4
      %s20 = int_to_ptr.vmem [resolvable:$true] %s19
      %25 = dma.hbm_to_vmem [thread:$0]  %s18, 12544, %s20, [#allocation3], 128, 128, 8
    $region9: #{mlp_forward.1} parent=1 // pred_fallthru
      _
    // Predicated region
    $region10: #{mlp_forward.1} parent=1 // pred_check
      _
    $region11: #{mlp_forward.1} parent=1 // pred_check_branch
      %27 = sbr.rel (0) target = $region13
    $region12: #{mlp_forward.1} parent=1 // pred_region
      _
    $region13: #{mlp_forward.1} parent=1 // pred_fallthru
      _
    // Predicated region
    $region14: #{mlp_forward.1} parent=1 // pred_check
      _
    $region15: #{mlp_forward.1} parent=1 // pred_check_branch
      %29 = sbr.rel (0) target = $region17
    $region16: #{mlp_forward.1} parent=1 // pred_region
      _
    $region17: #{mlp_forward.1} parent=1 // pred_fallthru
      _
    // Predicated region
    $region18: #{mlp_forward.1} parent=1 // pred_check
      _
    $region19: #{mlp_forward.1} parent=1 // pred_check_branch
      %31 = sbr.rel (0) target = $region21
    $region20: #{mlp_forward.1} parent=1 // pred_region
      _
    $region21: #{mlp_forward.1} parent=1 // pred_fallthru
      _
    // Predicated region
    $region22: #{mlp_forward.1} parent=1 // pred_check
      _
    $region23: #{mlp_forward.1} parent=1 // pred_check_branch
      %33 = sbr.rel (0) target = $region25
    $region24: #{mlp_forward.1} parent=1 // pred_region
      %35 = dma.done [#allocation3], 12544
    $region25: #{mlp_forward.1} parent=1 // pred_fallthru
      _
    %v36 = vld [vmem:[%s0] sm:$0xff]
    %v37 = vld [vmem:[%s0 + $0x8] sm:$0xff]
    %v38 = vld [vmem:[%s0 + $0x10] sm:$0xff]
    %v39 = vld [vmem:[%s0 + $0x18] sm:$0xff]
    %v40 = vld [vmem:[%s0 + $0x20] sm:$0xff]
    %v41 = vld [vmem:[%s0 + $0x28] sm:$0xff]
    %v42 = vld [vmem:[%s0 + $0x30] sm:$0xff]
    %v43 = vld [vmem:[#allocation2] sm:$0xff]
    %v44 = vld [vmem:[#allocation2 + $0x8] sm:$0xff]
    %v45 = vld [vmem:[#allocation2 + $0x10] sm:$0xff]
    %v46 = vld [vmem:[#allocation2 + $0x18] sm:$0xff]
    %v47 = vld [vmem:[#allocation2 + $0x20] sm:$0xff]
    %v48 = vld [vmem:[#allocation2 + $0x28] sm:$0xff]
    %v49 = vld [vmem:[#allocation2 + $0x30] sm:$0xff]
    %v50 = vld [vmem:[#allocation2 + $0x38] sm:$0xff]
    %v51 = vld [vmem:[#allocation2 + $0x40] sm:$0xff]
    %v52 = vld [vmem:[#allocation2 + $0x48] sm:$0xff]
    %v53 = vld [vmem:[#allocation2 + $0x50] sm:$0xff]
    %v54 = vld [vmem:[#allocation2 + $0x58] sm:$0xff]
    %v55 = vld [vmem:[#allocation2 + $0x60] sm:$0xff]
    %v56 = vld [vmem:[#allocation2 + $0x68] sm:$0xff]
    %v57 = vld [vmem:[#allocation2 + $0x70] sm:$0xff]
    %v58 = vld [vmem:[#allocation2 + $0x78] sm:$0xff]
    %v59 = vld [vmem:[#allocation2 + $0x80] sm:$0xff]
    %v60 = vld [vmem:[#allocation2 + $0x88] sm:$0xff]
    %v61 = vld [vmem:[#allocation2 + $0x90] sm:$0xff]
    %v62 = vld [vmem:[#allocation2 + $0x98] sm:$0xff]
    %v63 = vld [vmem:[#allocation2 + $0xa0] sm:$0xff]
    %v64 = vld [vmem:[#allocation2 + $0xa8] sm:$0xff]
    %v65 = vld [vmem:[#allocation2 + $0xb0] sm:$0xff]
    %v66 = vld [vmem:[#allocation2 + $0xb8] sm:$0xff]
    %v67 = vld [vmem:[#allocation2 + $0xc0] sm:$0xff]
    %v68 = vld [vmem:[#allocation2 + $0xc8] sm:$0xff]
    %v69 = vld [vmem:[#allocation2 + $0xd0] sm:$0xff]
    %v70 = vld [vmem:[#allocation2 + $0xd8] sm:$0xff]
    %v71 = vld [vmem:[#allocation2 + $0xe0] sm:$0xff]
    %v72 = vld [vmem:[#allocation2 + $0xe8] sm:$0xff]
    %v73 = vld [vmem:[#allocation2 + $0xf0] sm:$0xff]
    %v74 = vld [vmem:[#allocation2 + $0xf8] sm:$0xff]
    %v75 = vld [vmem:[#allocation2 + $0x100] sm:$0xff]
    %v76 = vld [vmem:[#allocation2 + $0x108] sm:$0xff]
    %v77 = vld [vmem:[#allocation2 + $0x110] sm:$0xff]
    %v78 = vld [vmem:[#allocation2 + $0x118] sm:$0xff]
    %v79 = vld [vmem:[#allocation2 + $0x120] sm:$0xff]
    %v80 = vld [vmem:[#allocation2 + $0x128] sm:$0xff]
    %v81 = vld [vmem:[#allocation2 + $0x130] sm:$0xff]
    %v82 = vld [vmem:[#allocation2 + $0x138] sm:$0xff]
    %v83 = vld [vmem:[#allocation2 + $0x140] sm:$0xff]
    %v84 = vld [vmem:[#allocation2 + $0x148] sm:$0xff]
    %v85 = vld [vmem:[#allocation2 + $0x150] sm:$0xff]
    %v86 = vld [vmem:[#allocation2 + $0x158] sm:$0xff]
    %v87 = vld [vmem:[#allocation2 + $0x160] sm:$0xff]
    %v88 = vld [vmem:[#allocation2 + $0x168] sm:$0xff]
    %v89 = vld [vmem:[#allocation2 + $0x170] sm:$0xff]
    %v90 = vld [vmem:[#allocation2 + $0x178] sm:$0xff]
    %v91 = vld [vmem:[#allocation2 + $0x180] sm:$0xff]
    %v92 = vld [vmem:[#allocation2 + $0x188] sm:$0xff]
    %v93 = vld [vmem:[#allocation2 + $0x190] sm:$0xff]
    %v94 = vld [vmem:[#allocation2 + $0x198] sm:$0xff]
    %v95 = vld [vmem:[#allocation2 + $0x1a0] sm:$0xff]
    %v96 = vld [vmem:[#allocation2 + $0x1a8] sm:$0xff]
    %v97 = vld [vmem:[#allocation2 + $0x1b0] sm:$0xff]
    %v98 = vld [vmem:[#allocation2 + $0x1b8] sm:$0xff]
    %v99 = vld [vmem:[#allocation2 + $0x1c0] sm:$0xff]
    %v100 = vld [vmem:[#allocation2 + $0x1c8] sm:$0xff]
    %v101 = vld [vmem:[#allocation2 + $0x1d0] sm:$0xff]
    %v102 = vld [vmem:[#allocation2 + $0x1d8] sm:$0xff]
    %v103 = vld [vmem:[#allocation2 + $0x1e0] sm:$0xff]
    %v104 = vld [vmem:[#allocation2 + $0x1e8] sm:$0xff]
    %v105 = vld [vmem:[#allocation2 + $0x1f0] sm:$0xff]
    %v106 = vld [vmem:[#allocation2 + $0x1f8] sm:$0xff]
    %v107 = vld [vmem:[#allocation2 + $0x200] sm:$0xff]
    %v108 = vld [vmem:[#allocation2 + $0x208] sm:$0xff]
    %v109 = vld [vmem:[#allocation2 + $0x210] sm:$0xff]
    %v110 = vld [vmem:[#allocation2 + $0x218] sm:$0xff]
    %v111 = vld [vmem:[#allocation2 + $0x220] sm:$0xff]
    %v112 = vld [vmem:[#allocation2 + $0x228] sm:$0xff]
    %v113 = vld [vmem:[#allocation2 + $0x230] sm:$0xff]
    %v114 = vld [vmem:[#allocation2 + $0x238] sm:$0xff]
    %v115 = vld [vmem:[#allocation2 + $0x240] sm:$0xff]
    %v116 = vld [vmem:[#allocation2 + $0x248] sm:$0xff]
    %v117 = vld [vmem:[#allocation2 + $0x250] sm:$0xff]
    %v118 = vld [vmem:[#allocation2 + $0x258] sm:$0xff]
    %v119 = vld [vmem:[#allocation2 + $0x260] sm:$0xff]
    %v120 = vld [vmem:[#allocation2 + $0x268] sm:$0xff]
    %v121 = vld [vmem:[#allocation2 + $0x270] sm:$0xff]
    %v122 = vld [vmem:[#allocation2 + $0x278] sm:$0xff]
    %v123 = vld [vmem:[#allocation2 + $0x280] sm:$0xff]
    %v124 = vld [vmem:[#allocation2 + $0x288] sm:$0xff]
    %v125 = vld [vmem:[#allocation2 + $0x290] sm:$0xff]
    %v126 = vld [vmem:[#allocation2 + $0x298] sm:$0xff]
    %v127 = vld [vmem:[#allocation2 + $0x2a0] sm:$0xff]
    %v128 = vld [vmem:[#allocation2 + $0x2a8] sm:$0xff]
    %v129 = vld [vmem:[#allocation2 + $0x2b0] sm:$0xff]
    %v130 = vld [vmem:[#allocation2 + $0x2b8] sm:$0xff]
    %v131 = vld [vmem:[#allocation2 + $0x2c0] sm:$0xff]
    %v132 = vld [vmem:[#allocation2 + $0x2c8] sm:$0xff]
    %v133 = vld [vmem:[#allocation2 + $0x2d0] sm:$0xff]
    %v134 = vld [vmem:[#allocation2 + $0x2d8] sm:$0xff]
    %v135 = vld [vmem:[#allocation2 + $0x2e0] sm:$0xff]
    %v136 = vld [vmem:[#allocation2 + $0x2e8] sm:$0xff]
    %v137 = vld [vmem:[#allocation2 + $0x2f0] sm:$0xff]
    %v138 = vld [vmem:[#allocation2 + $0x2f8] sm:$0xff]
    %v139 = vld [vmem:[#allocation2 + $0x300] sm:$0xff]
    %v140 = vld [vmem:[#allocation2 + $0x308] sm:$0xff]
    %v141 = vld [vmem:[%s2] sm:$0x1]
    %v143 = vperm.slane %v141, 0
    %vm145 = vcmask 130048
    %v147 = vsel %vm145, %v42, 0
    %149 = vmatpush.msra.mxu0 %v58
    %150 = vmatpush.msra.mxu0 %v57
    %151 = vmatpush.msra.mxu0 %v56
    %152 = vmatpush.msra.mxu0 %v55
    %153 = vmatpush.msra.mxu0 %v54
    %154 = vmatpush.msra.mxu0 %v53
    %155 = vmatpush.msra.mxu0 %v52
    %156 = vmatpush.msra.mxu0 %v51
    %157 = vmatpush.msra.mxu0 %v50
    %158 = vmatpush.msra.mxu0 %v49
    %159 = vmatpush.msra.mxu0 %v48
    %160 = vmatpush.msra.mxu0 %v47
    %161 = vmatpush.msra.mxu0 %v46
    %162 = vmatpush.msra.mxu0 %v45
    %163 = vmatpush.msra.mxu0 %v44
    %164 = vmatpush.msra.mxu0 %v43
    %165 = vmatmul.f32.gmra.mxu0 %v36
    %v166 = vpop.f32.mrf.mxu0
    %v167 = vadd.f32 %v143, %v166
    %168 = vdwg.mxu0
    %169 = vmatpush.msra.mxu0 %v74
    %170 = vmatpush.msra.mxu0 %v73
    %171 = vmatpush.msra.mxu0 %v72
    %172 = vmatpush.msra.mxu0 %v71
    %173 = vmatpush.msra.mxu0 %v70
    %174 = vmatpush.msra.mxu0 %v69
    %175 = vmatpush.msra.mxu0 %v68
    %176 = vmatpush.msra.mxu0 %v67
    %177 = vmatpush.msra.mxu0 %v66
    %178 = vmatpush.msra.mxu0 %v65
    %179 = vmatpush.msra.mxu0 %v64
    %180 = vmatpush.msra.mxu0 %v63
    %181 = vmatpush.msra.mxu0 %v62
    %182 = vmatpush.msra.mxu0 %v61
    %183 = vmatpush.msra.mxu0 %v60
    %184 = vmatpush.msra.mxu0 %v59
    %185 = vmatmul.f32.gmra.mxu0 %v37
    %v186 = vpop.f32.mrf.mxu0
    %v187 = vadd.f32 %v167, %v186
    %188 = vdwg.mxu0
    %189 = vmatpush.msra.mxu0 %v90
    %190 = vmatpush.msra.mxu0 %v89
    %191 = vmatpush.msra.mxu0 %v88
    %192 = vmatpush.msra.mxu0 %v87
    %193 = vmatpush.msra.mxu0 %v86
    %194 = vmatpush.msra.mxu0 %v85
    %195 = vmatpush.msra.mxu0 %v84
    %196 = vmatpush.msra.mxu0 %v83
    %197 = vmatpush.msra.mxu0 %v82
    %198 = vmatpush.msra.mxu0 %v81
    %199 = vmatpush.msra.mxu0 %v80
    %200 = vmatpush.msra.mxu0 %v79
    %201 = vmatpush.msra.mxu0 %v78
    %202 = vmatpush.msra.mxu0 %v77
    %203 = vmatpush.msra.mxu0 %v76
    %204 = vmatpush.msra.mxu0 %v75
    %205 = vmatmul.f32.gmra.mxu0 %v38
    %v206 = vpop.f32.mrf.mxu0
    %v207 = vadd.f32 %v187, %v206
    %208 = vdwg.mxu0
    %209 = vmatpush.msra.mxu0 %v106
    %210 = vmatpush.msra.mxu0 %v105
    %211 = vmatpush.msra.mxu0 %v104
    %212 = vmatpush.msra.mxu0 %v103
    %213 = vmatpush.msra.mxu0 %v102
    %214 = vmatpush.msra.mxu0 %v101
    %215 = vmatpush.msra.mxu0 %v100
    %216 = vmatpush.msra.mxu0 %v99
    %217 = vmatpush.msra.mxu0 %v98
    %218 = vmatpush.msra.mxu0 %v97
    %219 = vmatpush.msra.mxu0 %v96
    %220 = vmatpush.msra.mxu0 %v95
    %221 = vmatpush.msra.mxu0 %v94
    %222 = vmatpush.msra.mxu0 %v93
    %223 = vmatpush.msra.mxu0 %v92
    %224 = vmatpush.msra.mxu0 %v91
    %225 = vmatmul.f32.gmra.mxu0 %v39
    %v226 = vpop.f32.mrf.mxu0
    %v227 = vadd.f32 %v207, %v226
    %228 = vdwg.mxu0
    %229 = vmatpush.msra.mxu0 %v122
    %230 = vmatpush.msra.mxu0 %v121
    %231 = vmatpush.msra.mxu0 %v120
    %232 = vmatpush.msra.mxu0 %v119
    %233 = vmatpush.msra.mxu0 %v118
    %234 = vmatpush.msra.mxu0 %v117
    %235 = vmatpush.msra.mxu0 %v116
    %236 = vmatpush.msra.mxu0 %v115
    %237 = vmatpush.msra.mxu0 %v114
    %238 = vmatpush.msra.mxu0 %v113
    %239 = vmatpush.msra.mxu0 %v112
    %240 = vmatpush.msra.mxu0 %v111
    %241 = vmatpush.msra.mxu0 %v110
    %242 = vmatpush.msra.mxu0 %v109
    %243 = vmatpush.msra.mxu0 %v108
    %244 = vmatpush.msra.mxu0 %v107
    %245 = vmatmul.f32.gmra.mxu0 %v40
    %v246 = vpop.f32.mrf.mxu0
    %v247 = vadd.f32 %v227, %v246
    %248 = vdwg.mxu0
    %249 = vmatpush.msra.mxu0 %v138
    %250 = vmatpush.msra.mxu0 %v137
    %251 = vmatpush.msra.mxu0 %v136
    %252 = vmatpush.msra.mxu0 %v135
    %253 = vmatpush.msra.mxu0 %v134
    %254 = vmatpush.msra.mxu0 %v133
    %255 = vmatpush.msra.mxu0 %v132
    %256 = vmatpush.msra.mxu0 %v131
    %257 = vmatpush.msra.mxu0 %v130
    %258 = vmatpush.msra.mxu0 %v129
    %259 = vmatpush.msra.mxu0 %v128
    %260 = vmatpush.msra.mxu0 %v127
    %261 = vmatpush.msra.mxu0 %v126
    %262 = vmatpush.msra.mxu0 %v125
    %263 = vmatpush.msra.mxu0 %v124
    %264 = vmatpush.msra.mxu0 %v123
    %265 = vmatmul.f32.gmra.mxu0 %v41
    %v266 = vpop.f32.mrf.mxu0
    %v267 = vadd.f32 %v247, %v266
    %268 = vdwg.mxu0
    %269 = vmatpush.msra.mxu0 0.0
    %270 = vmatpush.msra.mxu0 0.0
    %271 = vmatpush.msra.mxu0 0.0
    %272 = vmatpush.msra.mxu0 0.0
    %273 = vmatpush.msra.mxu0 0.0
    %274 = vmatpush.msra.mxu0 0.0
    %275 = vmatpush.msra.mxu0 0.0
    %276 = vmatpush.msra.mxu0 0.0
    %277 = vmatpush.msra.mxu0 0.0
    %278 = vmatpush.msra.mxu0 0.0
    %279 = vmatpush.msra.mxu0 0.0
    %280 = vmatpush.msra.mxu0 0.0
    %281 = vmatpush.msra.mxu0 0.0
    %282 = vmatpush.msra.mxu0 0.0
    %283 = vmatpush.msra.mxu0 %v140
    %284 = vmatpush.msra.mxu0 %v139
    %285 = vmatmul.f32.gmra.mxu0 %v147
    %v286 = vpop.f32.mrf.mxu0
    %v287 = vadd.f32 %v267, %v286
    %288 = vdwg.mxu0
    %v289 = vmax.f32 %v287, 0.0
    %v290 = vld [vmem:[%s3] sm:$0xff]
    %v291 = vld [vmem:[%s3 + $0x8] sm:$0xff]
    %v292 = vld [vmem:[%s3 + $0x10] sm:$0xff]
    %v293 = vld [vmem:[%s3 + $0x18] sm:$0xff]
    %v294 = vld [vmem:[%s3 + $0x20] sm:$0xff]
    %v295 = vld [vmem:[%s3 + $0x28] sm:$0xff]
    %v296 = vld [vmem:[%s3 + $0x30] sm:$0xff]
    %v297 = vld [vmem:[%s3 + $0x38] sm:$0xff]
    %v298 = vld [vmem:[%s3 + $0x40] sm:$0xff]
    %v299 = vld [vmem:[%s3 + $0x48] sm:$0xff]
    %v300 = vld [vmem:[%s3 + $0x50] sm:$0xff]
    %v301 = vld [vmem:[%s3 + $0x58] sm:$0xff]
    %v302 = vld [vmem:[%s3 + $0x60] sm:$0xff]
    %v303 = vld [vmem:[%s3 + $0x68] sm:$0xff]
    %v304 = vld [vmem:[%s3 + $0x70] sm:$0xff]
    %v305 = vld [vmem:[%s3 + $0x78] sm:$0xff]
    %v306 = vld [vmem:[%s4] sm:$0x1]
    %v308 = vperm.slane %v306, 0
    %310 = vmatpush.msra.mxu0 %v305
    %311 = vmatpush.msra.mxu0 %v304
    %312 = vmatpush.msra.mxu0 %v303
    %313 = vmatpush.msra.mxu0 %v302
    %314 = vmatpush.msra.mxu0 %v301
    %315 = vmatpush.msra.mxu0 %v300
    %316 = vmatpush.msra.mxu0 %v299
    %317 = vmatpush.msra.mxu0 %v298
    %318 = vmatpush.msra.mxu0 %v297
    %319 = vmatpush.msra.mxu0 %v296
    %320 = vmatpush.msra.mxu0 %v295
    %321 = vmatpush.msra.mxu0 %v294
    %322 = vmatpush.msra.mxu0 %v293
    %323 = vmatpush.msra.mxu0 %v292
    %324 = vmatpush.msra.mxu0 %v291
    %325 = vmatpush.msra.mxu0 %v290
    %326 = vmatmul.f32.gmra.mxu0 %v289
    %v327 = vpop.f32.mrf.mxu0
    %v328 = vadd.f32 %v308, %v327
    %329 = vdwg.mxu0
    %v330 = vpack.c.bf16 %v328, %v328
    %331 = vst [vmem:[%s5] sm:$0xf] %v330
    // Predicated region
    $region26: #{mlp_forward.1} parent=1 // pred_check
      _
    $region27: #{mlp_forward.1} parent=1 // pred_check_branch
      %333 = sbr.rel (0) target = $region29
    $region28: #{mlp_forward.1} parent=1 // pred_region
      _
    $region29: #{mlp_forward.1} parent=1 // pred_fallthru
      _
    // Predicated region
    $region30: #{mlp_forward.1} parent=1 // pred_check
      _
    $region31: #{mlp_forward.1} parent=1 // pred_check_branch
      %335 = sbr.rel (0) target = $region33
    $region32: #{mlp_forward.1} parent=1 // pred_region
      _
    $region33: #{mlp_forward.1} parent=1 // pred_fallthru
      _
    %336 = vsyncpa [#allocation3], 1

</llo_original>
